<compile_context>
chip_gen: v7x
topology: tpu7x:2x2x1
jax: 0.10.0
libtpu: 0.0.40
codegen_flags: <defaults>
</compile_context>

<pallas_src>
import jax
import jax.numpy as jnp
from jax.experimental import pallas as pl
from jax.experimental.pallas import tpu as pltpu


# Scoped-VMEM request: comfortably above the ~5-10 MiB these kernels actually use,
# below v7x's 64 MiB physical per-TensorCore limit (and fine on v5e/v6e).
_VMEM_LIMIT = 48 * 1024 * 1024
# Budget for keeping the full feature matrix resident in the fused-hop kernel.
_FUSED_VMEM_BUDGET = 32 * 1024 * 1024


def _round_up(n, m):
    return ((n + m - 1) // m) * m


def _fit_tile(dim, target, granule):
    """Pick a tile (<= target, (8,128)-friendly) and the padded dim it divides."""
    # `target` must itself be a multiple of `granule` (512 is, for both 8 and 128).
    t = min(target, _round_up(dim, granule))
    return t, _round_up(dim, t)


def _pad2(x, shape):
    pr, pc = shape[0] - x.shape[0], shape[1] - x.shape[1]
    if pr == 0 and pc == 0:
        return x
    return jnp.pad(x, ((0, pr), (0, pc)))


# ---------------------------------------------------------------------------
# Tiled matmul with fused bias epilogue:  out = A @ B + bias
# ---------------------------------------------------------------------------
def _matmul_bias_kernel(a_ref, b_ref, bias_ref, o_ref, acc_ref):
    @pl.when(pl.program_id(2) == 0)
    def _():
        acc_ref[...] = jnp.zeros_like(acc_ref)

    acc_ref[...] += jnp.dot(
        a_ref[...], b_ref[...], preferred_element_type=jnp.float32
    )

    @pl.when(pl.program_id(2) == pl.num_programs(2) - 1)
    def _():
        # Bias add rides the VPU while the MXU drains -> effectively free.
        o_ref[...] = (acc_ref[...] + bias_ref[...]).astype(o_ref.dtype)


def pallas_matmul(a, b, bias=None, *, out_dtype=jnp.float32,
                  tm=512, tn=512, tk=512, compute_dtype=jnp.bfloat16):
    """C = A @ B (+ bias) on the MXU; bf16 inputs, f32 accumulation, padded tiles."""
    M, K = a.shape
    K2, N = b.shape
    assert K == K2
    tm, Mp = _fit_tile(M, tm, 8)      # sublane axis of A / out
    tn, Np = _fit_tile(N, tn, 128)    # lane axis of B / out (lane-dense output)
    tk, Kp = _fit_tile(K, tk, 128)    # lane axis of A / sublane axis of B

    a_p = _pad2(a, (Mp, Kp)).astype(compute_dtype)
    b_p = _pad2(b, (Kp, Np)).astype(compute_dtype)
    if bias is None:
        bias_p = jnp.zeros((1, Np), jnp.float32)
    else:
        bias_p = _pad2(bias.astype(jnp.float32).reshape(1, N), (1, Np))

    grid = (Mp // tm, Np // tn, Kp // tk)
    cost = pl.CostEstimate(
        flops=int(2 * Mp * Np * Kp),
        transcendentals=0,
        bytes_accessed=int((Mp * Kp + Kp * Np) * 2 + Mp * Np * 4 + Np * 4),
    )

    out = pl.pallas_call(
        _matmul_bias_kernel,
        out_shape=jax.ShapeDtypeStruct((Mp, Np), out_dtype),
        grid_spec=pltpu.PrefetchScalarGridSpec(
            num_scalar_prefetch=0,
            grid=grid,
            in_specs=[
                pl.BlockSpec((tm, tk), lambda i, j, k: (i, k)),
                pl.BlockSpec((tk, tn), lambda i, j, k: (k, j)),
                pl.BlockSpec((1, tn), lambda i, j, k: (0, j)),
            ],
            out_specs=pl.BlockSpec((tm, tn), lambda i, j, k: (i, j)),
            scratch_shapes=[pltpu.VMEM((tm, tn), jnp.float32)],
        ),
        compiler_params=pltpu.CompilerParams(
            dimension_semantics=("parallel", "parallel", "arbitrary"),
            vmem_limit_bytes=_VMEM_LIMIT,
        ),
        cost_estimate=cost,
    )(a_p, b_p, bias_p)

    if (Mp, Np) != (M, N):
        out = out[:M, :N]
    return out


# ---------------------------------------------------------------------------
# Fused multi-hop propagation:  h = adj^order @ x  in a single pallas_call.
# The feature matrix lives in VMEM ping/pong scratch; only adj tiles stream.
# ---------------------------------------------------------------------------
def _fused_prop_kernel(x_ref, adj_ref, o_ref, ping_ref, pong_ref, acc_ref):
    hop = pl.program_id(0)
    i = pl.program_id(1)
    k = pl.program_id(2)
    n_hops = pl.num_programs(0)
    nk = pl.num_programs(2)
    t = adj_ref.shape[1]  # tm == tk == t (same padded N dimension)

    # Stage the input features into the ping buffer once, at the very first step.
    @pl.when((hop == 0) & (i == 0) & (k == 0))
    def _():
        ping_ref[...] = x_ref[...]

    @pl.when(k == 0)
    def _():
        acc_ref[...] = jnp.zeros_like(acc_ref)

    reads_ping = (hop % 2) == 0
    row = pl.multiple_of(k * t, t)

    @pl.when(reads_ping)
    def _():
        acc_ref[...] += jnp.dot(
            adj_ref[...],
            ping_ref[pl.ds(row, t), :].astype(adj_ref.dtype),
            preferred_element_type=jnp.float32,
        )

    @pl.when(jnp.logical_not(reads_ping))
    def _():
        acc_ref[...] += jnp.dot(
            adj_ref[...],
            pong_ref[pl.ds(row, t), :].astype(adj_ref.dtype),
            preferred_element_type=jnp.float32,
        )

    @pl.when(k == nk - 1)
    def _():
        orow = pl.multiple_of(i * t, t)

        # Write this hop's row-block into the *other* buffer for the next hop.
        @pl.when(reads_ping)
        def _():
            pong_ref[pl.ds(orow, t), :] = acc_ref[...]

        @pl.when(jnp.logical_not(reads_ping))
        def _():
            ping_ref[pl.ds(orow, t), :] = acc_ref[...]

        @pl.when(hop == n_hops - 1)
        def _():
            o_ref[...] = acc_ref[...].astype(o_ref.dtype)


def _fused_propagate(adj, x, order, t, Np, Fp):
    N, F = x.shape
    adj_p = _pad2(adj, (Np, Np)).astype(jnp.bfloat16)   # big HBM stream -> bf16
    x_p = _pad2(x, (Np, Fp)).astype(jnp.float32)        # resident once, keep f32

    grid = (order, Np // t, Np // t)
    cost = pl.CostEstimate(
        flops=int(2 * order * Np * Np * Fp),
        transcendentals=0,
        bytes_accessed=int(order * Np * Np * 2 + 2 * Np * Fp * 4),
    )

    out = pl.pallas_call(
        _fused_prop_kernel,
        out_shape=jax.ShapeDtypeStruct((Np, Fp), jnp.float32),
        grid_spec=pltpu.PrefetchScalarGridSpec(
            num_scalar_prefetch=0,
            grid=grid,
            in_specs=[
                pl.BlockSpec((Np, Fp), lambda h, i, k: (0, 0)),  # x: VMEM resident
                pl.BlockSpec((t, t), lambda h, i, k: (i, k)),    # adj: streamed tiles
            ],
            out_specs=pl.BlockSpec((t, Fp), lambda h, i, k: (i, 0)),
            scratch_shapes=[
                pltpu.VMEM((Np, Fp), jnp.float32),  # ping
                pltpu.VMEM((Np, Fp), jnp.float32),  # pong
                pltpu.VMEM((t, Fp), jnp.float32),   # accumulator
            ],
        ),
        compiler_params=pltpu.CompilerParams(
            # Hop h+1 needs every row of hop h, so the row axis cannot be split
            # across TensorCores -> all axes "arbitrary" here (the per-hop matmul
            # fallback keeps "parallel" axes for megacore on huge graphs).
            dimension_semantics=("arbitrary", "arbitrary", "arbitrary"),
            vmem_limit_bytes=_VMEM_LIMIT,
        ),
        cost_estimate=cost,
    )(x_p, adj_p)
    return out[:N, :F]


def pallas_propagate(adj, x, order, *, tile=512):
    """h = adj^order @ x, fusing all hops into one kernel when x fits in VMEM."""
    if order <= 0:
        return x.astype(jnp.float32)
    N, F = x.shape
    t, Np = _fit_tile(N, tile, 128)   # shared padded N (rows & cols of adj)
    Fp = _round_up(F, 128)

    resident_bytes = (
        2 * Np * Fp * 4        # ping + pong feature buffers (f32)
        + 2 * Np * Fp * 4      # x input window (conservatively double-buffered)
        + 2 * t * t * 2        # adj tiles, double-buffered bf16
        + 2 * t * Fp * 4       # output blocks, double-buffered
        + t * Fp * 4           # accumulator
    )
    if resident_bytes <= _FUSED_VMEM_BUDGET:
        return _fused_propagate(adj, x, order, t, Np, Fp)

    # Fallback for graphs whose feature matrix does not fit VMEM: one tiled
    # matmul per hop (M/N grid axes stay "parallel" for megacore sharding).
    h = x
    for _ in range(order):
        h = pallas_matmul(adj, h)
    return h


# ---------------------------------------------------------------------------
# Module
# ---------------------------------------------------------------------------
class TrainableSGConvolution:
    """JAX/Pallas port of graphgallery's TrainableSGConvolution."""

    def __init__(self, in_channels, out_channels, use_bias=False, order=2,
                 cached=True, *, key):
        self.in_channels = in_channels
        self.out_channels = out_channels
        self.order = order
        self.cached = cached
        self.cache = None
        # nn.Linear-style init: U(-1/sqrt(fan_in), 1/sqrt(fan_in)).
        wkey, bkey = jax.random.split(key)
        bound = 1.0 / (in_channels ** 0.5)
        # PyTorch weight layout [out, in] kept for reference; transpose ONCE here
        # so the forward never pays a per-call transpose.
        self.weight = jax.random.uniform(
            wkey, (out_channels, in_channels), jnp.float32, -bound, bound
        )
        self.weight_t = jnp.asarray(self.weight.T)
        self.bias = (
            jax.random.uniform(bkey, (out_channels,), jnp.float32, -bound, bound)
            if use_bias else None
        )

    def __call__(self, x, adj):
        # TODO(synk): the Python-side `self.cache` mirrors the original module's
        # eager-mode stateful caching; it is not jit/vmap-safe.
        if self.cache is None or not self.cached:
            if (not self.cached) and self.out_channels < self.in_channels:
                # Algebraic reorder: adj^k @ (x @ W.T) == (adj^k @ x) @ W.T, but the
                # propagation matmuls now run at out_channels lanes instead of
                # in_channels.  Only used when the (pre-projection) cache is not
                # kept, so the module's caching semantics are unchanged.
                h = pallas_matmul(x, self.weight_t)
                h = pallas_propagate(adj, h, self.order)
                if self.bias is not None:
                    h = h + self.bias[None, :]   # bias does not commute through adj
                self.cache = h                   # never read (cached=False)
                return h
            x = pallas_propagate(adj, x, self.order)
            self.cache = x
        else:
            x = self.cache
        # Linear head with the bias folded into the kernel epilogue.
        return pallas_matmul(x, self.weight_t, self.bias)


if __name__ == "__main__":
    key = jax.random.PRNGKey(0)
    k_x, k_adj, k1, k2 = jax.random.split(key, 4)

    N, F_IN, F_OUT, ORDER = 64, 32, 16, 2

    x = jax.random.normal(k_x, (N, F_IN), jnp.float32)

    # Dense symmetric-normalized adjacency with self loops (typical SGC input).
    a = (jax.random.uniform(k_adj, (N, N)) < 0.1).astype(jnp.float32)
    a = jnp.maximum(a, a.T) + jnp.eye(N, dtype=jnp.float32)
    deg = jnp.sum(a, axis=1)
    d_inv_sqrt = 1.0 / jnp.sqrt(deg)
    adj = a * d_inv_sqrt[:, None] * d_inv_sqrt[None, :]

    def reference(layer, x, adj):
        h = x
        for _ in range(layer.order):
            h = adj @ h
        out = h @ layer.weight.T
        if layer.bias is not None:
            out = out + layer.bias[None, :]
        return out

    # Layer 1: cached path -> fused multi-hop propagation + fused-bias linear head.
    layer1 = TrainableSGConvolution(F_IN, F_OUT, use_bias=True, order=ORDER,
                                    cached=True, key=k1)
    out1 = jax.block_until_ready(layer1(x, adj))
    ref1 = reference(layer1, x, adj)
    assert out1.shape == (N, F_OUT)
    assert jnp.allclose(out1, ref1, atol=5e-2, rtol=5e-2), "layer1 mismatch vs ref"

    # Second call must hit the cache and reproduce the result exactly.
    out1b = jax.block_until_ready(layer1(x, adj))
    assert jnp.array_equal(out1, out1b), "cached call mismatch"

    # Layer 2: uncached path -> exercises the project-before-propagate reorder.
    layer2 = TrainableSGConvolution(F_IN, F_OUT, use_bias=False, order=ORDER,
                                    cached=False, key=k2)
    out2 = jax.block_until_ready(layer2(x, adj))
    ref2 = reference(layer2, x, adj)
    assert out2.shape == (N, F_OUT)
    assert jnp.allclose(out2, ref2, atol=5e-2, rtol=5e-2), "layer2 mismatch vs ref"

    print("KERNEL_OK")
</pallas_src>

<mosaic_0001>
module attributes {stable_mosaic.version = 11 : i64} {
  func.func @_fused_prop_kernel(%arg0: i32, %arg1: i32, %arg2: i32, %arg3: memref<128x128xf32, #tpu.memory_space<vmem>>, %arg4: memref<128x128xbf16, #tpu.memory_space<vmem>>, %arg5: memref<128x128xf32, #tpu.memory_space<vmem>>, %arg6: memref<128x128xf32, #tpu.memory_space<vmem>>, %arg7: memref<128x128xf32, #tpu.memory_space<vmem>>, %arg8: memref<128x128xf32, #tpu.memory_space<vmem>>) attributes {dimension_semantics = [#tpu.dimension_semantics<arbitrary>, #tpu.dimension_semantics<arbitrary>, #tpu.dimension_semantics<arbitrary>], iteration_bounds = array<i64: 2, 1, 1>, scalar_prefetch = 0 : i64, scratch_operands = 3 : i64, tpu.core_type = #tpu.core_type<tc>, window_params = [{pipeline_mode = #tpu.pipeline_mode<synchronous>, transform_indices = @transform_0, window_bounds = array<i64: 128, 128>}, {transform_indices = @transform_1, window_bounds = array<i64: 128, 128>}, {transform_indices = @transform_2, window_bounds = array<i64: 128, 128>}]} {
    %c0_i32 = arith.constant 0 : i32
    %0 = arith.cmpi eq, %arg0, %c0_i32 : i32
    %c0_i32_0 = arith.constant 0 : i32
    %1 = arith.cmpi eq, %arg1, %c0_i32_0 : i32
    %2 = arith.andi %0, %1 : i1
    %c0_i32_1 = arith.constant 0 : i32
    %3 = arith.cmpi eq, %arg2, %c0_i32_1 : i32
    %4 = arith.andi %2, %3 : i1
    %5 = arith.extui %4 : i1 to i32
    %c0_i32_2 = arith.constant 0 : i32
    %6 = arith.cmpi ne, %5, %c0_i32_2 : i32
    scf.if %6 {
      %c0 = arith.constant 0 : index
      %c0_14 = arith.constant 0 : index
      %31 = vector.load %arg3[%c0, %c0_14] : memref<128x128xf32, #tpu.memory_space<vmem>>, vector<128x128xf32>
      %c0_15 = arith.constant 0 : index
      %c0_16 = arith.constant 0 : index
      %32 = vector.load %arg6[%c0_15, %c0_16] : memref<128x128xf32, #tpu.memory_space<vmem>>, vector<128x128xf32>
      tpu.vector_store %arg6[%c0_15, %c0_16], %31 {strides = array<i32>} : memref<128x128xf32, #tpu.memory_space<vmem>>, vector<128x128xf32>,
    } else {
    }
    %c0_i32_3 = arith.constant 0 : i32
    %7 = arith.cmpi eq, %arg2, %c0_i32_3 : i32
    %8 = arith.extui %7 : i1 to i32
    %c0_i32_4 = arith.constant 0 : i32
    %9 = arith.cmpi ne, %8, %c0_i32_4 : i32
    scf.if %9 {
      %cst = arith.constant 0.000000e+00 : f32
      %31 = vector.broadcast %cst : f32 to vector<128x128xf32>
      %c0 = arith.constant 0 : index
      %c0_14 = arith.constant 0 : index
      %32 = vector.load %arg8[%c0, %c0_14] : memref<128x128xf32, #tpu.memory_space<vmem>>, vector<128x128xf32>
      tpu.vector_store %arg8[%c0, %c0_14], %31 {strides = array<i32>} : memref<128x128xf32, #tpu.memory_space<vmem>>, vector<128x128xf32>,
    } else {
    }
    %c2_i32 = arith.constant 2 : i32
    %c0_i32_5 = arith.constant 0 : i32
    %10 = arith.cmpi eq, %c2_i32, %c0_i32_5 : i32
    %c1_i32 = arith.constant 1 : i32
    %11 = arith.select %10, %c1_i32, %c2_i32 : i32
    %12 = arith.remsi %arg0, %11 : i32
    %c0_i32_6 = arith.constant 0 : i32
    %13 = arith.cmpi ne, %12, %c0_i32_6 : i32
    %c0_i32_7 = arith.constant 0 : i32
    %14 = arith.cmpi slt, %12, %c0_i32_7 : i32
    %c0_i32_8 = arith.constant 0 : i32
    %15 = arith.cmpi slt, %11, %c0_i32_8 : i32
    %16 = arith.xori %14, %15 : i1
    %17 = arith.andi %16, %13 : i1
    %18 = arith.addi %12, %11 : i32
    %19 = arith.select %17, %18, %12 : i32
    %c0_i32_9 = arith.constant 0 : i32
    %20 = arith.cmpi eq, %19, %c0_i32_9 : i32
    %c128_i32 = arith.constant 128 : i32
    %21 = arith.muli %arg2, %c128_i32 : i32
    %22 = tpu.assume_multiple %21, 128 : i32
    %23 = arith.extui %20 : i1 to i32
    %c0_i32_10 = arith.constant 0 : i32
    %24 = arith.cmpi ne, %23, %c0_i32_10 : i32
    scf.if %24 {
      %c0 = arith.constant 0 : index
      %c0_14 = arith.constant 0 : index
      %31 = vector.load %arg8[%c0, %c0_14] : memref<128x128xf32, #tpu.memory_space<vmem>>, vector<128x128xf32>
      %c0_15 = arith.constant 0 : index
      %c0_16 = arith.constant 0 : index
      %32 = vector.load %arg4[%c0_15, %c0_16] : memref<128x128xbf16, #tpu.memory_space<vmem>>, vector<128x128xbf16>
      %33 = arith.index_cast %22 : i32 to index
      %c0_17 = arith.constant 0 : index
      %34 = vector.load %arg6[%33, %c0_17] : memref<128x128xf32, #tpu.memory_space<vmem>>, vector<128x128xf32>
      %35 = arith.truncf %34 : vector<128x128xf32> to vector<128x128xbf16>
      %cst = arith.constant dense<0.000000e+00> : vector<128x128xf32>
      %36 = tpu.matmul %32, %35, %cst {dimension_numbers = #tpu.dot_dimension_numbers<[1], [0], [0], [1], [0, 0, 1, 1], [], []>} : vector<128x128xbf16>, vector<128x128xbf16>, vector<128x128xf32> -> vector<128x128xf32>
      %37 = arith.addf %31, %36 : vector<128x128xf32>
      %c0_18 = arith.constant 0 : index
      %c0_19 = arith.constant 0 : index
      %38 = vector.load %arg8[%c0_18, %c0_19] : memref<128x128xf32, #tpu.memory_space<vmem>>, vector<128x128xf32>
      tpu.vector_store %arg8[%c0_18, %c0_19], %37 {strides = array<i32>} : memref<128x128xf32, #tpu.memory_space<vmem>>, vector<128x128xf32>,
    } else {
    }
    %true = arith.constant true
    %25 = arith.xori %20, %true : i1
    %26 = arith.extui %25 : i1 to i32
    %c0_i32_11 = arith.constant 0 : i32
    %27 = arith.cmpi ne, %26, %c0_i32_11 : i32
    scf.if %27 {
      %c0 = arith.constant 0 : index
      %c0_14 = arith.constant 0 : index
      %31 = vector.load %arg8[%c0, %c0_14] : memref<128x128xf32, #tpu.memory_space<vmem>>, vector<128x128xf32>
      %c0_15 = arith.constant 0 : index
      %c0_16 = arith.constant 0 : index
      %32 = vector.load %arg4[%c0_15, %c0_16] : memref<128x128xbf16, #tpu.memory_space<vmem>>, vector<128x128xbf16>
      %33 = arith.index_cast %22 : i32 to index
      %c0_17 = arith.constant 0 : index
      %34 = vector.load %arg7[%33, %c0_17] : memref<128x128xf32, #tpu.memory_space<vmem>>, vector<128x128xf32>
      %35 = arith.truncf %34 : vector<128x128xf32> to vector<128x128xbf16>
      %cst = arith.constant dense<0.000000e+00> : vector<128x128xf32>
      %36 = tpu.matmul %32, %35, %cst {dimension_numbers = #tpu.dot_dimension_numbers<[1], [0], [0], [1], [0, 0, 1, 1], [], []>} : vector<128x128xbf16>, vector<128x128xbf16>, vector<128x128xf32> -> vector<128x128xf32>
      %37 = arith.addf %31, %36 : vector<128x128xf32>
      %c0_18 = arith.constant 0 : index
      %c0_19 = arith.constant 0 : index
      %38 = vector.load %arg8[%c0_18, %c0_19] : memref<128x128xf32, #tpu.memory_space<vmem>>, vector<128x128xf32>
      tpu.vector_store %arg8[%c0_18, %c0_19], %37 {strides = array<i32>} : memref<128x128xf32, #tpu.memory_space<vmem>>, vector<128x128xf32>,
    } else {
    }
    %c0_i32_12 = arith.constant 0 : i32
    %28 = arith.cmpi eq, %arg2, %c0_i32_12 : i32
    %29 = arith.extui %28 : i1 to i32
    %c0_i32_13 = arith.constant 0 : i32
    %30 = arith.cmpi ne, %29, %c0_i32_13 : i32
    scf.if %30 {
      %c128_i32_14 = arith.constant 128 : i32
      %31 = arith.muli %arg1, %c128_i32_14 : i32
      %32 = tpu.assume_multiple %31, 128 : i32
      %33 = arith.extui %20 : i1 to i32
      %c0_i32_15 = arith.constant 0 : i32
      %34 = arith.cmpi ne, %33, %c0_i32_15 : i32
      scf.if %34 {
        %c0 = arith.constant 0 : index
        %c0_20 = arith.constant 0 : index
        %41 = vector.load %arg8[%c0, %c0_20] : memref<128x128xf32, #tpu.memory_space<vmem>>, vector<128x128xf32>
        %42 = arith.index_cast %32 : i32 to index
        %c0_21 = arith.constant 0 : index
        %43 = vector.load %arg7[%42, %c0_21] : memref<128x128xf32, #tpu.memory_space<vmem>>, vector<128x128xf32>
        tpu.vector_store %arg7[%42, %c0_21], %41 {strides = array<i32>} : memref<128x128xf32, #tpu.memory_space<vmem>>, vector<128x128xf32>,
      } else {
      }
      %true_16 = arith.constant true
      %35 = arith.xori %20, %true_16 : i1
      %36 = arith.extui %35 : i1 to i32
      %c0_i32_17 = arith.constant 0 : i32
      %37 = arith.cmpi ne, %36, %c0_i32_17 : i32
      scf.if %37 {
        %c0 = arith.constant 0 : index
        %c0_20 = arith.constant 0 : index
        %41 = vector.load %arg8[%c0, %c0_20] : memref<128x128xf32, #tpu.memory_space<vmem>>, vector<128x128xf32>
        %42 = arith.index_cast %32 : i32 to index
        %c0_21 = arith.constant 0 : index
        %43 = vector.load %arg6[%42, %c0_21] : memref<128x128xf32, #tpu.memory_space<vmem>>, vector<128x128xf32>
        tpu.vector_store %arg6[%42, %c0_21], %41 {strides = array<i32>} : memref<128x128xf32, #tpu.memory_space<vmem>>, vector<128x128xf32>,
      } else {
      }
      %c1_i32_18 = arith.constant 1 : i32
      %38 = arith.cmpi eq, %arg0, %c1_i32_18 : i32
      %39 = arith.extui %38 : i1 to i32
      %c0_i32_19 = arith.constant 0 : i32
      %40 = arith.cmpi ne, %39, %c0_i32_19 : i32
      scf.if %40 {
        %c0 = arith.constant 0 : index
        %c0_20 = arith.constant 0 : index
        %41 = vector.load %arg8[%c0, %c0_20] : memref<128x128xf32, #tpu.memory_space<vmem>>, vector<128x128xf32>
        %c0_21 = arith.constant 0 : index
        %c0_22 = arith.constant 0 : index
        %42 = vector.load %arg5[%c0_21, %c0_22] : memref<128x128xf32, #tpu.memory_space<vmem>>, vector<128x128xf32>
        tpu.vector_store %arg5[%c0_21, %c0_22], %41 {strides = array<i32>} : memref<128x128xf32, #tpu.memory_space<vmem>>, vector<128x128xf32>,
      } else {
      }
    } else {
    }
    return
  }
  func.func @transform_0(%arg0: i32, %arg1: i32, %arg2: i32) -> (i32, i32) {
    %c0_i32 = arith.constant 0 : i32
    %c0_i32_0 = arith.constant 0 : i32
    %c0_i32_1 = arith.constant 0 : i32
    return %c0_i32, %c0_i32_0 : i32, i32
  }
  func.func @transform_1(%arg0: i32, %arg1: i32, %arg2: i32) -> (i32, i32) {
    %c0_i32 = arith.constant 0 : i32
    return %arg1, %arg2 : i32, i32
  }
  func.func @transform_2(%arg0: i32, %arg1: i32, %arg2: i32) -> (i32, i32) {
    %c0_i32 = arith.constant 0 : i32
    %c0_i32_0 = arith.constant 0 : i32
    return %arg1, %c0_i32 : i32, i32
  }
}

</mosaic_0001>

<llo_original>
// kernel: tpu_custom_call.1
$region0: #{tpu_custom_call.1}
  #allocation0 [shape = 'u32[]', space=smem, size = 0x4, offset = 0x4, fixed_abs, tag = 'smem constant byte address 0x4 - core index']
  #allocation1 [shape = 'u32[144,128]{1,0:T(1,128)}', space=vmem, size = 0x12000, scoped, tag = 'internal scratch']
  #allocation2 [shape = 'f32[128,128]{1,0:T(8,128)}', space=vmem, size = 0x10000, scoped, tag = 'scratch operand']
  #allocation3 [shape = 'f32[128,128]{1,0:T(8,128)}', space=vmem, size = 0x10000, scoped, tag = 'scratch operand']
  #allocation4 [shape = 'f32[128,128]{1,0:T(8,128)}', space=vmem, size = 0x10000, scoped, tag = 'scratch operand']
  %s0 = inlined_call_operand.hbm [shape: f32[128,128], index: 0, kind: input, shape index: {}]
  %s1 = inlined_call_operand.hbm [shape: bf16[128,128], index: 1, kind: input, shape index: {}]
  %s2 = inlined_call_operand.hbm [shape: f32[128,128], index: 2, kind: output, shape index: {}]
  %s3 = sld [smem:[#allocation0]]
  $region81: #{tpu_custom_call.1} parent=0
    _
  %s5 = ssub.s32 1, %s3
  %s6 = scalar_select 0, %s5, %s3
  $region1: #{tpu_custom_call.1} parent=0
    #allocation5 [shape = 'u8[65536]{0}', space=vmem, size = 0x10000, scoped, tag = 'input window, operand 0, single buffered']
    #allocation6 [shape = 's32[2]{0}', space=sflag, size = 0x8, scoped, tag = 'scoped memory for tpu_custom_call.1']
    #allocation7 [shape = 's32[2]{0}', space=sflag, size = 0x8, scoped, tag = 'scoped memory for tpu_custom_call.1']
    #allocation8 [shape = 'u8[32768]{0}', space=vmem, size = 0x8000, scoped, tag = 'input window, operand 1, single buffered']
    #allocation9 [shape = 's32[1]{0}', space=sflag, size = 0x4, scoped, tag = 'scoped memory for tpu_custom_call.1']
    #allocation10 [shape = 'u8[65536]{0}', space=vmem, size = 0x10000, scoped, tag = 'output window, operand 0, single buffered']
    %7 = vsyncpa [#allocation6], 0
    %8 = vsyncpa [#allocation9], 0
    %9 = vsyncpa [#allocation7], 0
    loop: start=0, step=1, limit=4
    $region2: #{tpu_custom_call.1} parent=1 // loop_pre_header
      _
    $region3: #{tpu_custom_call.1} parent=1 // loop_header
      %s11 = sphi 0, %s15
      %p12 = scmp.ge.s32.totalorder %s11, 4
      %s18 = sphi 0, %s37
      %s19 = sphi 0, %s33
      %s20 = sphi 0, %s29
      %s21 = sphi 0, %s18
      %s22 = sphi 0, %s19
      %s23 = sphi 0, %s20
      %s24 = sphi 0, %s21
      %s25 = sphi 0, %s22
      %s26 = sphi 0, %s23
      %s38 = sphi 0, %s38
      %s40 = sphi 0, %s38
      %s41 = sphi 0, %s40
      %s55 = sphi 0, %s41
      %s63 = sphi 0, %s65
      %s66 = sphi 0, %s63
      %s67 = sphi 0, %s66
      %s83 = sphi 0, %s67
      %s89 = sphi 0, %s91
      %s92 = sphi 0, %s89
      %s93 = sphi 0, %s92
      %s109 = sphi 0, %s93
    $region4: #{tpu_custom_call.1} parent=1 // loop_header_branch
      %14 = sbr.rel (%p12) target = $region8
    $region5: #{tpu_custom_call.1} parent=1 // loop_body
      %s16 = ssub.s32 %s11, 1
      %s17 = ssub.s32 %s11, 2
      %s27 = sadd.s32 1, %s20
      %p28 = scmp.ge.s32.totalorder %s27, 1
      %s29 = scalar_select %p28, 0, %s27
      %s30 = sadd.s32 1, %s19
      %s31 = scalar_select %p28, %s30, %s19
      %p32 = scmp.ge.s32.totalorder %s31, 1
      %s33 = scalar_select %p32, 0, %s31
      %s34 = sadd.s32 1, %s18
      %s35 = scalar_select %p32, %s34, %s18
      %p36 = scmp.ge.s32.totalorder %s35, 2
      %s37 = scalar_select %p36, 0, %s35
      %s39 = sadd.s32 %s38, 1
      %p42 = scmp.eq.s32.totalorder %s11, 1
      %p43 = scmp.ne.s32.totalorder %s38, %s40
      %p44 = scmp.eq.s32.totalorder %s11, 0
      %p45 = por %p43, %p44
      %p46 = scmp.ne.s32.totalorder %s38, %s40
      %p47 = scmp.eq.s32.totalorder %s16, 1
      %p48 = por %p46, %p47
      %p49 = scmp.ne.s32.totalorder %s40, %s41
      %p50 = scmp.eq.s32.totalorder %s16, 0
      %p51 = por %p49, %p50
      %p52 = scmp.ne.s32.totalorder %s40, %s41
      %p53 = scmp.eq.s32.totalorder %s17, 1
      %p54 = por %p52, %p53
      %p56 = scmp.ne.s32.totalorder %s41, %s55
      %p57 = scmp.eq.s32.totalorder %s17, 0
      %p58 = por %p56, %p57
      %s59 = ssub.s32 %s19, %s33
      %s60 = ssub.s32 %s20, %s29
      %s61 = sor.u32 %s59, %s60
      %p62 = scmp.eq.s32.totalorder %s61, 0
      %s64 = sadd.s32 %s63, 1
      %s65 = scalar_select %p62, %s63, %s64
      %p68 = pneg %p62
      %p69 = scmp.eq.s32.totalorder %s11, 1
      %p70 = por %p68, %p69
      %p71 = scmp.ne.s32.totalorder %s63, %s66
      %p72 = scmp.eq.s32.totalorder %s11, 0
      %p73 = por %p71, %p72
      %p74 = scmp.ne.s32.totalorder %s63, %s66
      %p75 = scmp.eq.s32.totalorder %s16, 1
      %p76 = por %p74, %p75
      %p77 = scmp.ne.s32.totalorder %s66, %s67
      %p78 = scmp.eq.s32.totalorder %s16, 0
      %p79 = por %p77, %p78
      %p80 = scmp.ne.s32.totalorder %s66, %s67
      %p81 = scmp.eq.s32.totalorder %s17, 1
      %p82 = por %p80, %p81
      %p84 = scmp.ne.s32.totalorder %s67, %s83
      %p85 = scmp.eq.s32.totalorder %s17, 0
      %p86 = por %p84, %p85
      %s87 = ssub.s32 %s19, %s33
      %p88 = scmp.eq.s32.totalorder %s87, 0
      %s90 = sadd.s32 %s89, 1
      %s91 = scalar_select %p88, %s89, %s90
      %p94 = pneg %p88
      %p95 = scmp.eq.s32.totalorder %s11, 1
      %p96 = por %p94, %p95
      %p97 = scmp.ne.s32.totalorder %s89, %s92
      %p98 = scmp.eq.s32.totalorder %s11, 0
      %p99 = por %p97, %p98
      %p100 = scmp.ne.s32.totalorder %s89, %s92
      %p101 = scmp.eq.s32.totalorder %s16, 1
      %p102 = por %p100, %p101
      %p103 = scmp.ne.s32.totalorder %s92, %s93
      %p104 = scmp.eq.s32.totalorder %s16, 0
      %p105 = por %p103, %p104
      %p106 = scmp.ne.s32.totalorder %s92, %s93
      %p107 = scmp.eq.s32.totalorder %s17, 1
      %p108 = por %p106, %p107
      %p110 = scmp.ne.s32.totalorder %s93, %s109
      %p111 = scmp.eq.s32.totalorder %s17, 0
      %p112 = por %p110, %p111
      %p113 = scmp.le.s32.totalorder 1, %s11
      %p114 = scmp.lt.s32.totalorder %s11, 3
      %p115 = pnand %p113, %p114
      %p116 = pneg %p115
      // Predicated region
      $region9: #{tpu_custom_call.1} parent=5 // pred_check
        _
      $region10: #{tpu_custom_call.1} parent=5 // pred_check_branch
        %118 = sbr.rel (%p115) target = $region12
      $region11: #{tpu_custom_call.1} parent=5 // pred_region
        %s119 = ssub.s32 %s11, 1
        // Predicated region
        $region13: #{tpu_custom_call.1} parent=11 // pred_check
          %p120 = pneg %p51
        $region14: #{tpu_custom_call.1} parent=11 // pred_check_branch
          %122 = sbr.rel (%p120) target = $region16
        $region15: #{tpu_custom_call.1} parent=11 // pred_region
          %s124 = ssub.s32 2048, 2048
          %125 = vsyncadd [#allocation6], %s124
          %s126 = sshll.u32 [#allocation5], 4
          %s127 = int_to_ptr.vmem [resolvable:$true] %s126
          %132 = dma.hbm_to_vmem [thread:$0]  %s0, 2048, %s127, [#allocation6], 128, 128, 8
        $region16: #{tpu_custom_call.1} parent=11 // pred_fallthru
          _
        // Predicated region
        $region17: #{tpu_custom_call.1} parent=11 // pred_check
          %p133 = pneg %p79
        $region18: #{tpu_custom_call.1} parent=11 // pred_check_branch
          %135 = sbr.rel (%p133) target = $region20
        $region19: #{tpu_custom_call.1} parent=11 // pred_region
          %s136 = smul.u32 16, %s22
          %s138 = ssub.s32 1024, 1024
          %139 = vsyncadd [#allocation9], %s138
          %s140 = sadd.s32 %s23, %s136
          %s141 = smul.addr %s140, 64
          %s142 = scalar_lea.hbm %s1, %s141
          %s143 = sshll.u32 [#allocation8], 4
          %s144 = int_to_ptr.vmem [resolvable:$true] %s143
          %149 = dma.hbm_to_vmem [thread:$0]  %s142, 1024, %s144, [#allocation9], 64, 64, 4
        $region20: #{tpu_custom_call.1} parent=11 // pred_fallthru
          _
      $region12: #{tpu_custom_call.1} parent=5 // pred_fallthru
        _
      %p150 = scmp.lt.s32.totalorder %s11, 2
      // Predicated region
      $region21: #{tpu_custom_call.1} parent=5 // pred_check
        %p151 = pneg %p150
      $region22: #{tpu_custom_call.1} parent=5 // pred_check_branch
        %153 = sbr.rel (%p151) target = $region24
      $region23: #{tpu_custom_call.1} parent=5 // pred_region
        _
      $region24: #{tpu_custom_call.1} parent=5 // pred_fallthru
        _
      %p154 = scmp.le.s32.totalorder 1, %s11
      %p155 = scmp.lt.s32.totalorder %s11, 3
      %p156 = pnand %p154, %p155
      %p157 = pneg %p156
      // Predicated region
      $region25: #{tpu_custom_call.1} parent=5 // pred_check
        _
      $region26: #{tpu_custom_call.1} parent=5 // pred_check_branch
        %159 = sbr.rel (%p156) target = $region28
      $region27: #{tpu_custom_call.1} parent=5 // pred_region
        %s160 = ssub.s32 %s11, 1
        // Predicated region
        $region29: #{tpu_custom_call.1} parent=27 // pred_check
          %p161 = pneg %p51
        $region30: #{tpu_custom_call.1} parent=27 // pred_check_branch
          %163 = sbr.rel (%p161) target = $region32
        $region31: #{tpu_custom_call.1} parent=27 // pred_region
          %164 = dma.done [#allocation6], 2048
        $region32: #{tpu_custom_call.1} parent=27 // pred_fallthru
          _
        // Predicated region
        $region33: #{tpu_custom_call.1} parent=27 // pred_check
          %p165 = pneg %p79
        $region34: #{tpu_custom_call.1} parent=27 // pred_check_branch
          %167 = sbr.rel (%p165) target = $region36
        $region35: #{tpu_custom_call.1} parent=27 // pred_region
          %168 = dma.done [#allocation9], 1024
        $region36: #{tpu_custom_call.1} parent=27 // pred_fallthru
          _
        %p169 = pneg %p51
        %p170 = pneg %p48
        %p171 = pneg %p79
        %p172 = pneg %p76
        %p173 = pneg %p105
        %p174 = pneg %p102
        %s175 = smul.u32 16, %s22
        %s176 = smul.u32 16, %s22
        %p178 = scmp.eq.s32.totalorder %s21, 0
        %p179 = scmp.eq.s32.totalorder %s22, 0
        %p180 = pnand %p178, %p179
        %p181 = pneg %p180
        %p182 = scmp.eq.s32.totalorder %s23, 0
        %p183 = pnand %p181, %p182
        %p184 = pneg %p183
        // Predicated region
        $region37: #{tpu_custom_call.1} parent=27 // pred_check
          _
        $region38: #{tpu_custom_call.1} parent=27 // pred_check_branch
          %186 = sbr.rel (%p183) target = $region40
        $region39: #{tpu_custom_call.1} parent=27 // pred_region
          %v187 = vld [vmem:[#allocation5] sm:$0xff]
          %v188 = vld [vmem:[#allocation5 + $0x8] sm:$0xff]
          %v189 = vld [vmem:[#allocation5 + $0x10] sm:$0xff]
          %v190 = vld [vmem:[#allocation5 + $0x18] sm:$0xff]
          %v191 = vld [vmem:[#allocation5 + $0x20] sm:$0xff]
          %v192 = vld [vmem:[#allocation5 + $0x28] sm:$0xff]
          %v193 = vld [vmem:[#allocation5 + $0x30] sm:$0xff]
          %v194 = vld [vmem:[#allocation5 + $0x38] sm:$0xff]
          %v195 = vld [vmem:[#allocation5 + $0x40] sm:$0xff]
          %v196 = vld [vmem:[#allocation5 + $0x48] sm:$0xff]
          %v197 = vld [vmem:[#allocation5 + $0x50] sm:$0xff]
          %v198 = vld [vmem:[#allocation5 + $0x58] sm:$0xff]
          %v199 = vld [vmem:[#allocation5 + $0x60] sm:$0xff]
          %v200 = vld [vmem:[#allocation5 + $0x68] sm:$0xff]
          %v201 = vld [vmem:[#allocation5 + $0x70] sm:$0xff]
          %v202 = vld [vmem:[#allocation5 + $0x78] sm:$0xff]
          %203 = vst [vmem:[#allocation2] sm:$0xff] %v187
          %204 = vst [vmem:[#allocation2 + $0x8] sm:$0xff] %v188
          %205 = vst [vmem:[#allocation2 + $0x10] sm:$0xff] %v189
          %206 = vst [vmem:[#allocation2 + $0x18] sm:$0xff] %v190
          %207 = vst [vmem:[#allocation2 + $0x20] sm:$0xff] %v191
          %208 = vst [vmem:[#allocation2 + $0x28] sm:$0xff] %v192
          %209 = vst [vmem:[#allocation2 + $0x30] sm:$0xff] %v193
          %210 = vst [vmem:[#allocation2 + $0x38] sm:$0xff] %v194
          %211 = vst [vmem:[#allocation2 + $0x40] sm:$0xff] %v195
          %212 = vst [vmem:[#allocation2 + $0x48] sm:$0xff] %v196
          %213 = vst [vmem:[#allocation2 + $0x50] sm:$0xff] %v197
          %214 = vst [vmem:[#allocation2 + $0x58] sm:$0xff] %v198
          %215 = vst [vmem:[#allocation2 + $0x60] sm:$0xff] %v199
          %216 = vst [vmem:[#allocation2 + $0x68] sm:$0xff] %v200
          %217 = vst [vmem:[#allocation2 + $0x70] sm:$0xff] %v201
          %218 = vst [vmem:[#allocation2 + $0x78] sm:$0xff] %v202
        $region40: #{tpu_custom_call.1} parent=27 // pred_fallthru
          _
        // Predicated region
        $region41: #{tpu_custom_call.1} parent=27 // pred_check
          %p219 = pneg %p182
        $region42: #{tpu_custom_call.1} parent=27 // pred_check_branch
          %221 = sbr.rel (%p219) target = $region44
        $region43: #{tpu_custom_call.1} parent=27 // pred_region
          %222 = vst [vmem:[#allocation4] sm:$0xff] 0.0
          %223 = vst [vmem:[#allocation4 + $0x8] sm:$0xff] 0.0
          %224 = vst [vmem:[#allocation4 + $0x10] sm:$0xff] 0.0
          %225 = vst [vmem:[#allocation4 + $0x18] sm:$0xff] 0.0
          %226 = vst [vmem:[#allocation4 + $0x20] sm:$0xff] 0.0
          %227 = vst [vmem:[#allocation4 + $0x28] sm:$0xff] 0.0
          %228 = vst [vmem:[#allocation4 + $0x30] sm:$0xff] 0.0
          %229 = vst [vmem:[#allocation4 + $0x38] sm:$0xff] 0.0
          %230 = vst [vmem:[#allocation4 + $0x40] sm:$0xff] 0.0
          %231 = vst [vmem:[#allocation4 + $0x48] sm:$0xff] 0.0
          %232 = vst [vmem:[#allocation4 + $0x50] sm:$0xff] 0.0
          %233 = vst [vmem:[#allocation4 + $0x58] sm:$0xff] 0.0
          %234 = vst [vmem:[#allocation4 + $0x60] sm:$0xff] 0.0
          %235 = vst [vmem:[#allocation4 + $0x68] sm:$0xff] 0.0
          %236 = vst [vmem:[#allocation4 + $0x70] sm:$0xff] 0.0
          %237 = vst [vmem:[#allocation4 + $0x78] sm:$0xff] 0.0
        $region44: #{tpu_custom_call.1} parent=27 // pred_fallthru
          _
        %p238 = scmp.lt.s32.totalorder %s21, 0
        %s239 = ssub.s32 0, %s21
        %s240 = scalar_select %p238, %s239, %s21
        %s241 = sand.u32 %s240, 1
        %s242 = ssub.s32 0, %s241
        %s243 = scalar_select %p238, %s242, %s241
        %p244 = scmp.ne.s32.totalorder %s243, 0
        %p245 = scmp.lt.s32.totalorder %s243, 0
        %p246 = pnand %p245, %p244
        %p247 = pneg %p246
        %s248 = sadd.s32 %s243, 2
        %s249 = scalar_select %p247, %s248, %s243
        %p250 = scmp.eq.s32.totalorder %s249, 0
        %s251 = smul.u32 %s23, 128
        // Predicated region
        $region45: #{tpu_custom_call.1} parent=27 // pred_check
          %p252 = pneg %p250
        $region46: #{tpu_custom_call.1} parent=27 // pred_check_branch
          %254 = sbr.rel (%p252) target = $region48
        $region47: #{tpu_custom_call.1} parent=27 // pred_region
          %v255 = vld [vmem:[#allocation4] sm:$0xff]
          %v256 = vld [vmem:[#allocation4 + $0x8] sm:$0xff]
          %v257 = vld [vmem:[#allocation4 + $0x10] sm:$0xff]
          %v258 = vld [vmem:[#allocation4 + $0x18] sm:$0xff]
          %v259 = vld [vmem:[#allocation4 + $0x20] sm:$0xff]
          %v260 = vld [vmem:[#allocation4 + $0x28] sm:$0xff]
          %v261 = vld [vmem:[#allocation4 + $0x30] sm:$0xff]
          %v262 = vld [vmem:[#allocation4 + $0x38] sm:$0xff]
          %v263 = vld [vmem:[#allocation4 + $0x40] sm:$0xff]
          %v264 = vld [vmem:[#allocation4 + $0x48] sm:$0xff]
          %v265 = vld [vmem:[#allocation4 + $0x50] sm:$0xff]
          %v266 = vld [vmem:[#allocation4 + $0x58] sm:$0xff]
          %v267 = vld [vmem:[#allocation4 + $0x60] sm:$0xff]
          %v268 = vld [vmem:[#allocation4 + $0x68] sm:$0xff]
          %v269 = vld [vmem:[#allocation4 + $0x70] sm:$0xff]
          %v270 = vld [vmem:[#allocation4 + $0x78] sm:$0xff]
          %v271 = vld [vmem:[#allocation8] sm:$0xf]
          %v272 = vld [vmem:[#allocation8 + $0x4] sm:$0xf]
          %v273 = vld [vmem:[#allocation8 + $0x8] sm:$0xf]
          %v274 = vld [vmem:[#allocation8 + $0xc] sm:$0xf]
          %v275 = vld [vmem:[#allocation8 + $0x10] sm:$0xf]
          %v276 = vld [vmem:[#allocation8 + $0x14] sm:$0xf]
          %v277 = vld [vmem:[#allocation8 + $0x18] sm:$0xf]
          %v278 = vld [vmem:[#allocation8 + $0x1c] sm:$0xf]
          %v279 = vld [vmem:[#allocation8 + $0x20] sm:$0xf]
          %v280 = vld [vmem:[#allocation8 + $0x24] sm:$0xf]
          %v281 = vld [vmem:[#allocation8 + $0x28] sm:$0xf]
          %v282 = vld [vmem:[#allocation8 + $0x2c] sm:$0xf]
          %v283 = vld [vmem:[#allocation8 + $0x30] sm:$0xf]
          %v284 = vld [vmem:[#allocation8 + $0x34] sm:$0xf]
          %v285 = vld [vmem:[#allocation8 + $0x38] sm:$0xf]
          %v286 = vld [vmem:[#allocation8 + $0x3c] sm:$0xf]
          %s287 = scalar_lea.vmem [#allocation2], %s251
          %v288 = vld [vmem:[%s287] sm:$0xff]
          %v289 = vld [vmem:[%s287 + $0x8] sm:$0xff]
          %v290 = vld [vmem:[%s287 + $0x10] sm:$0xff]
          %v291 = vld [vmem:[%s287 + $0x18] sm:$0xff]
          %v292 = vld [vmem:[%s287 + $0x20] sm:$0xff]
          %v293 = vld [vmem:[%s287 + $0x28] sm:$0xff]
          %v294 = vld [vmem:[%s287 + $0x30] sm:$0xff]
          %v295 = vld [vmem:[%s287 + $0x38] sm:$0xff]
          %v296 = vld [vmem:[%s287 + $0x40] sm:$0xff]
          %v297 = vld [vmem:[%s287 + $0x48] sm:$0xff]
          %v298 = vld [vmem:[%s287 + $0x50] sm:$0xff]
          %v299 = vld [vmem:[%s287 + $0x58] sm:$0xff]
          %v300 = vld [vmem:[%s287 + $0x60] sm:$0xff]
          %v301 = vld [vmem:[%s287 + $0x68] sm:$0xff]
          %v302 = vld [vmem:[%s287 + $0x70] sm:$0xff]
          %v303 = vld [vmem:[%s287 + $0x78] sm:$0xff]
          %v304 = vpack.c.bf16 %v289, %v288
          %v305 = vpack.c.bf16 %v291, %v290
          %v306 = vpack.c.bf16 %v293, %v292
          %v307 = vpack.c.bf16 %v295, %v294
          %v308 = vpack.c.bf16 %v297, %v296
          %v309 = vpack.c.bf16 %v299, %v298
          %v310 = vpack.c.bf16 %v301, %v300
          %v311 = vpack.c.bf16 %v303, %v302
          %v328 = vunpack.c.l.b16 %v271
          %v329 = vunpack.c.l.b16 %v272
          %v330 = vunpack.c.l.b16 %v273
          %v331 = vunpack.c.l.b16 %v274
          %v332 = vunpack.c.l.b16 %v275
          %v333 = vunpack.c.l.b16 %v276
          %v334 = vunpack.c.l.b16 %v277
          %v335 = vunpack.c.l.b16 %v278
          %v336 = vunpack.c.l.b16 %v279
          %v337 = vunpack.c.l.b16 %v280
          %v338 = vunpack.c.l.b16 %v281
          %v339 = vunpack.c.l.b16 %v282
          %v340 = vunpack.c.l.b16 %v283
          %v341 = vunpack.c.l.b16 %v284
          %v342 = vunpack.c.l.b16 %v285
          %v343 = vunpack.c.l.b16 %v286
          %v344 = vpack.c.b16 %v329, %v328
          %v345 = vpack.c.b16 %v331, %v330
          %v346 = vpack.c.b16 %v333, %v332
          %v347 = vpack.c.b16 %v335, %v334
          %v348 = vpack.c.b16 %v337, %v336
          %v349 = vpack.c.b16 %v339, %v338
          %v350 = vpack.c.b16 %v341, %v340
          %v351 = vpack.c.b16 %v343, %v342
          %360 = vmatprep.subr.bf16.mxu0 0
          %361 = vmatpush1.bf16.msra.mxu0 %v304
          %362 = vmatprep.subr.bf16.mxu0 0
          %363 = vmatpush1.bf16.msra.mxu0 %v305
          %364 = vmatprep.subr.bf16.mxu0 0
          %365 = vmatpush1.bf16.msra.mxu0 %v306
          %366 = vmatprep.subr.bf16.mxu0 0
          %367 = vmatpush1.bf16.msra.mxu0 %v307
          %368 = vmatprep.subr.bf16.mxu0 0
          %369 = vmatpush1.bf16.msra.mxu0 %v308
          %370 = vmatprep.subr.bf16.mxu0 0
          %371 = vmatpush1.bf16.msra.mxu0 %v309
          %372 = vmatprep.subr.bf16.mxu0 0
          %373 = vmatpush1.bf16.msra.mxu0 %v310
          %374 = vmatprep.subr.bf16.mxu0 0
          %375 = vmatpush1.bf16.msra.mxu0 %v311
          %376 = vmatprep.subr.bf16.mxu0 0
          %377 = vmatpush1.bf16.msra.mxu0 0
          %378 = vmatprep.subr.bf16.mxu0 0
          %379 = vmatpush1.bf16.msra.mxu0 0
          %380 = vmatprep.subr.bf16.mxu0 0
          %381 = vmatpush1.bf16.msra.mxu0 0
          %382 = vmatprep.subr.bf16.mxu0 0
          %383 = vmatpush1.bf16.msra.mxu0 0
          %384 = vmatprep.subr.bf16.mxu0 0
          %385 = vmatpush1.bf16.msra.mxu0 0
          %386 = vmatprep.subr.bf16.mxu0 0
          %387 = vmatpush1.bf16.msra.mxu0 0
          %388 = vmatprep.subr.bf16.mxu0 0
          %389 = vmatpush1.bf16.msra.mxu0 0
          %390 = vmatprep.subr.bf16.mxu0 0
          %391 = vmatpush1.bf16.msra.mxu0 0
          %392 = vmatprep.mubr.bf16.mxu0 0
          %393 = vmatmul.mubr.bf16.gmra.mrb[0].mxu0 %v344
          %v394 = vpop.f32.mrb[0].mxu0
          %v395 = vadd.f32 0.0, %v394
          %v396 = vpop.f32.mrb[0].mxu0
          %v397 = vpop.f32.mrb[0].mxu0
          %v398 = vadd.f32 0.0, %v397
          %v399 = vpop.f32.mrb[0].mxu0
          %400 = vmatprep.mubr.bf16.mxu0 0
          %401 = vmatmul.mubr.bf16.gmra.mrb[0].mxu0 %v345
          %v402 = vpop.f32.mrb[0].mxu0
          %v403 = vadd.f32 0.0, %v402
          %v404 = vpop.f32.mrb[0].mxu0
          %v405 = vpop.f32.mrb[0].mxu0
          %v406 = vadd.f32 0.0, %v405
          %v407 = vpop.f32.mrb[0].mxu0
          %408 = vmatprep.mubr.bf16.mxu0 0
          %409 = vmatmul.mubr.bf16.gmra.mrb[0].mxu0 %v346
          %v410 = vpop.f32.mrb[0].mxu0
          %v411 = vadd.f32 0.0, %v410
          %v412 = vpop.f32.mrb[0].mxu0
          %v413 = vpop.f32.mrb[0].mxu0
          %v414 = vadd.f32 0.0, %v413
          %v415 = vpop.f32.mrb[0].mxu0
          %416 = vmatprep.mubr.bf16.mxu0 0
          %417 = vmatmul.mubr.bf16.gmra.mrb[0].mxu0 %v347
          %v418 = vpop.f32.mrb[0].mxu0
          %v419 = vadd.f32 0.0, %v418
          %v420 = vpop.f32.mrb[0].mxu0
          %v421 = vpop.f32.mrb[0].mxu0
          %v422 = vadd.f32 0.0, %v421
          %v423 = vpop.f32.mrb[0].mxu0
          %424 = vmatprep.mubr.bf16.mxu0 0
          %425 = vmatmul.mubr.bf16.gmra.mrb[0].mxu0 %v348
          %v426 = vpop.f32.mrb[0].mxu0
          %v427 = vadd.f32 0.0, %v426
          %v428 = vpop.f32.mrb[0].mxu0
          %v429 = vpop.f32.mrb[0].mxu0
          %v430 = vadd.f32 0.0, %v429
          %v431 = vpop.f32.mrb[0].mxu0
          %432 = vmatprep.mubr.bf16.mxu0 0
          %433 = vmatmul.mubr.bf16.gmra.mrb[0].mxu0 %v349
          %v434 = vpop.f32.mrb[0].mxu0
          %v435 = vadd.f32 0.0, %v434
          %v436 = vpop.f32.mrb[0].mxu0
          %v437 = vpop.f32.mrb[0].mxu0
          %v438 = vadd.f32 0.0, %v437
          %v439 = vpop.f32.mrb[0].mxu0
          %440 = vmatprep.mubr.bf16.mxu0 0
          %441 = vmatmul.mubr.bf16.gmra.mrb[0].mxu0 %v350
          %v442 = vpop.f32.mrb[0].mxu0
          %v443 = vadd.f32 0.0, %v442
          %v444 = vpop.f32.mrb[0].mxu0
          %v445 = vpop.f32.mrb[0].mxu0
          %v446 = vadd.f32 0.0, %v445
          %v447 = vpop.f32.mrb[0].mxu0
          %448 = vmatprep.mubr.bf16.mxu0 0
          %449 = vmatmul.mubr.bf16.gmra.mrb[0].mxu0 %v351
          %v450 = vpop.f32.mrb[0].mxu0
          %v451 = vadd.f32 0.0, %v450
          %v452 = vpop.f32.mrb[0].mxu0
          %v453 = vpop.f32.mrb[0].mxu0
          %v454 = vadd.f32 0.0, %v453
          %v455 = vpop.f32.mrb[0].mxu0
          %456 = vdwg.mxu0
          %v457 = vadd.f32 %v255, %v395
          %v458 = vadd.f32 %v256, %v398
          %v459 = vadd.f32 %v257, %v403
          %v460 = vadd.f32 %v258, %v406
          %v461 = vadd.f32 %v259, %v411
          %v462 = vadd.f32 %v260, %v414
          %v463 = vadd.f32 %v261, %v419
          %v464 = vadd.f32 %v262, %v422
          %v465 = vadd.f32 %v263, %v427
          %v466 = vadd.f32 %v264, %v430
          %v467 = vadd.f32 %v265, %v435
          %v468 = vadd.f32 %v266, %v438
          %v469 = vadd.f32 %v267, %v443
          %v470 = vadd.f32 %v268, %v446
          %v471 = vadd.f32 %v269, %v451
          %v472 = vadd.f32 %v270, %v454
          %473 = vst [vmem:[#allocation4] sm:$0xff] %v457
          %474 = vst [vmem:[#allocation4 + $0x8] sm:$0xff] %v458
          %475 = vst [vmem:[#allocation4 + $0x10] sm:$0xff] %v459
          %476 = vst [vmem:[#allocation4 + $0x18] sm:$0xff] %v460
          %477 = vst [vmem:[#allocation4 + $0x20] sm:$0xff] %v461
          %478 = vst [vmem:[#allocation4 + $0x28] sm:$0xff] %v462
          %479 = vst [vmem:[#allocation4 + $0x30] sm:$0xff] %v463
          %480 = vst [vmem:[#allocation4 + $0x38] sm:$0xff] %v464
          %481 = vst [vmem:[#allocation4 + $0x40] sm:$0xff] %v465
          %482 = vst [vmem:[#allocation4 + $0x48] sm:$0xff] %v466
          %483 = vst [vmem:[#allocation4 + $0x50] sm:$0xff] %v467
          %484 = vst [vmem:[#allocation4 + $0x58] sm:$0xff] %v468
          %485 = vst [vmem:[#allocation4 + $0x60] sm:$0xff] %v469
          %486 = vst [vmem:[#allocation4 + $0x68] sm:$0xff] %v470
          %487 = vst [vmem:[#allocation4 + $0x70] sm:$0xff] %v471
          %488 = vst [vmem:[#allocation4 + $0x78] sm:$0xff] %v472
        $region48: #{tpu_custom_call.1} parent=27 // pred_fallthru
          _
        %p489 = scmp.ne.s32.totalorder %s249, 0
        // Predicated region
        $region49: #{tpu_custom_call.1} parent=27 // pred_check
          %p490 = pneg %p489
        $region50: #{tpu_custom_call.1} parent=27 // pred_check_branch
          %492 = sbr.rel (%p490) target = $region52
        $region51: #{tpu_custom_call.1} parent=27 // pred_region
          %v493 = vld [vmem:[#allocation4] sm:$0xff]
          %v494 = vld [vmem:[#allocation4 + $0x8] sm:$0xff]
          %v495 = vld [vmem:[#allocation4 + $0x10] sm:$0xff]
          %v496 = vld [vmem:[#allocation4 + $0x18] sm:$0xff]
          %v497 = vld [vmem:[#allocation4 + $0x20] sm:$0xff]
          %v498 = vld [vmem:[#allocation4 + $0x28] sm:$0xff]
          %v499 = vld [vmem:[#allocation4 + $0x30] sm:$0xff]
          %v500 = vld [vmem:[#allocation4 + $0x38] sm:$0xff]
          %v501 = vld [vmem:[#allocation4 + $0x40] sm:$0xff]
          %v502 = vld [vmem:[#allocation4 + $0x48] sm:$0xff]
          %v503 = vld [vmem:[#allocation4 + $0x50] sm:$0xff]
          %v504 = vld [vmem:[#allocation4 + $0x58] sm:$0xff]
          %v505 = vld [vmem:[#allocation4 + $0x60] sm:$0xff]
          %v506 = vld [vmem:[#allocation4 + $0x68] sm:$0xff]
          %v507 = vld [vmem:[#allocation4 + $0x70] sm:$0xff]
          %v508 = vld [vmem:[#allocation4 + $0x78] sm:$0xff]
          %v509 = vld [vmem:[#allocation8] sm:$0xf]
          %v510 = vld [vmem:[#allocation8 + $0x4] sm:$0xf]
          %v511 = vld [vmem:[#allocation8 + $0x8] sm:$0xf]
          %v512 = vld [vmem:[#allocation8 + $0xc] sm:$0xf]
          %v513 = vld [vmem:[#allocation8 + $0x10] sm:$0xf]
          %v514 = vld [vmem:[#allocation8 + $0x14] sm:$0xf]
          %v515 = vld [vmem:[#allocation8 + $0x18] sm:$0xf]
          %v516 = vld [vmem:[#allocation8 + $0x1c] sm:$0xf]
          %v517 = vld [vmem:[#allocation8 + $0x20] sm:$0xf]
          %v518 = vld [vmem:[#allocation8 + $0x24] sm:$0xf]
          %v519 = vld [vmem:[#allocation8 + $0x28] sm:$0xf]
          %v520 = vld [vmem:[#allocation8 + $0x2c] sm:$0xf]
          %v521 = vld [vmem:[#allocation8 + $0x30] sm:$0xf]
          %v522 = vld [vmem:[#allocation8 + $0x34] sm:$0xf]
          %v523 = vld [vmem:[#allocation8 + $0x38] sm:$0xf]
          %v524 = vld [vmem:[#allocation8 + $0x3c] sm:$0xf]
          %s525 = scalar_lea.vmem [#allocation3], %s251
          %v526 = vld [vmem:[%s525] sm:$0xff]
          %v527 = vld [vmem:[%s525 + $0x8] sm:$0xff]
          %v528 = vld [vmem:[%s525 + $0x10] sm:$0xff]
          %v529 = vld [vmem:[%s525 + $0x18] sm:$0xff]
          %v530 = vld [vmem:[%s525 + $0x20] sm:$0xff]
          %v531 = vld [vmem:[%s525 + $0x28] sm:$0xff]
          %v532 = vld [vmem:[%s525 + $0x30] sm:$0xff]
          %v533 = vld [vmem:[%s525 + $0x38] sm:$0xff]
          %v534 = vld [vmem:[%s525 + $0x40] sm:$0xff]
          %v535 = vld [vmem:[%s525 + $0x48] sm:$0xff]
          %v536 = vld [vmem:[%s525 + $0x50] sm:$0xff]
          %v537 = vld [vmem:[%s525 + $0x58] sm:$0xff]
          %v538 = vld [vmem:[%s525 + $0x60] sm:$0xff]
          %v539 = vld [vmem:[%s525 + $0x68] sm:$0xff]
          %v540 = vld [vmem:[%s525 + $0x70] sm:$0xff]
          %v541 = vld [vmem:[%s525 + $0x78] sm:$0xff]
          %v542 = vpack.c.bf16 %v527, %v526
          %v543 = vpack.c.bf16 %v529, %v528
          %v544 = vpack.c.bf16 %v531, %v530
          %v545 = vpack.c.bf16 %v533, %v532
          %v546 = vpack.c.bf16 %v535, %v534
          %v547 = vpack.c.bf16 %v537, %v536
          %v548 = vpack.c.bf16 %v539, %v538
          %v549 = vpack.c.bf16 %v541, %v540
          %v566 = vunpack.c.l.b16 %v509
          %v567 = vunpack.c.l.b16 %v510
          %v568 = vunpack.c.l.b16 %v511
          %v569 = vunpack.c.l.b16 %v512
          %v570 = vunpack.c.l.b16 %v513
          %v571 = vunpack.c.l.b16 %v514
          %v572 = vunpack.c.l.b16 %v515
          %v573 = vunpack.c.l.b16 %v516
          %v574 = vunpack.c.l.b16 %v517
          %v575 = vunpack.c.l.b16 %v518
          %v576 = vunpack.c.l.b16 %v519
          %v577 = vunpack.c.l.b16 %v520
          %v578 = vunpack.c.l.b16 %v521
          %v579 = vunpack.c.l.b16 %v522
          %v580 = vunpack.c.l.b16 %v523
          %v581 = vunpack.c.l.b16 %v524
          %v582 = vpack.c.b16 %v567, %v566
          %v583 = vpack.c.b16 %v569, %v568
          %v584 = vpack.c.b16 %v571, %v570
          %v585 = vpack.c.b16 %v573, %v572
          %v586 = vpack.c.b16 %v575, %v574
          %v587 = vpack.c.b16 %v577, %v576
          %v588 = vpack.c.b16 %v579, %v578
          %v589 = vpack.c.b16 %v581, %v580
          %598 = vmatprep.subr.bf16.mxu0 0
          %599 = vmatpush1.bf16.msra.mxu0 %v542
          %600 = vmatprep.subr.bf16.mxu0 0
          %601 = vmatpush1.bf16.msra.mxu0 %v543
          %602 = vmatprep.subr.bf16.mxu0 0
          %603 = vmatpush1.bf16.msra.mxu0 %v544
          %604 = vmatprep.subr.bf16.mxu0 0
          %605 = vmatpush1.bf16.msra.mxu0 %v545
          %606 = vmatprep.subr.bf16.mxu0 0
          %607 = vmatpush1.bf16.msra.mxu0 %v546
          %608 = vmatprep.subr.bf16.mxu0 0
          %609 = vmatpush1.bf16.msra.mxu0 %v547
          %610 = vmatprep.subr.bf16.mxu0 0
          %611 = vmatpush1.bf16.msra.mxu0 %v548
          %612 = vmatprep.subr.bf16.mxu0 0
          %613 = vmatpush1.bf16.msra.mxu0 %v549
          %614 = vmatprep.subr.bf16.mxu0 0
          %615 = vmatpush1.bf16.msra.mxu0 0
          %616 = vmatprep.subr.bf16.mxu0 0
          %617 = vmatpush1.bf16.msra.mxu0 0
          %618 = vmatprep.subr.bf16.mxu0 0
          %619 = vmatpush1.bf16.msra.mxu0 0
          %620 = vmatprep.subr.bf16.mxu0 0
          %621 = vmatpush1.bf16.msra.mxu0 0
          %622 = vmatprep.subr.bf16.mxu0 0
          %623 = vmatpush1.bf16.msra.mxu0 0
          %624 = vmatprep.subr.bf16.mxu0 0
          %625 = vmatpush1.bf16.msra.mxu0 0
          %626 = vmatprep.subr.bf16.mxu0 0
          %627 = vmatpush1.bf16.msra.mxu0 0
          %628 = vmatprep.subr.bf16.mxu0 0
          %629 = vmatpush1.bf16.msra.mxu0 0
          %630 = vmatprep.mubr.bf16.mxu0 0
          %631 = vmatmul.mubr.bf16.gmra.mrb[0].mxu0 %v582
          %v632 = vpop.f32.mrb[0].mxu0
          %v633 = vadd.f32 0.0, %v632
          %v634 = vpop.f32.mrb[0].mxu0
          %v635 = vpop.f32.mrb[0].mxu0
          %v636 = vadd.f32 0.0, %v635
          %v637 = vpop.f32.mrb[0].mxu0
          %638 = vmatprep.mubr.bf16.mxu0 0
          %639 = vmatmul.mubr.bf16.gmra.mrb[0].mxu0 %v583
          %v640 = vpop.f32.mrb[0].mxu0
          %v641 = vadd.f32 0.0, %v640
          %v642 = vpop.f32.mrb[0].mxu0
          %v643 = vpop.f32.mrb[0].mxu0
          %v644 = vadd.f32 0.0, %v643
          %v645 = vpop.f32.mrb[0].mxu0
          %646 = vmatprep.mubr.bf16.mxu0 0
          %647 = vmatmul.mubr.bf16.gmra.mrb[0].mxu0 %v584
          %v648 = vpop.f32.mrb[0].mxu0
          %v649 = vadd.f32 0.0, %v648
          %v650 = vpop.f32.mrb[0].mxu0
          %v651 = vpop.f32.mrb[0].mxu0
          %v652 = vadd.f32 0.0, %v651
          %v653 = vpop.f32.mrb[0].mxu0
          %654 = vmatprep.mubr.bf16.mxu0 0
          %655 = vmatmul.mubr.bf16.gmra.mrb[0].mxu0 %v585
          %v656 = vpop.f32.mrb[0].mxu0
          %v657 = vadd.f32 0.0, %v656
          %v658 = vpop.f32.mrb[0].mxu0
          %v659 = vpop.f32.mrb[0].mxu0
          %v660 = vadd.f32 0.0, %v659
          %v661 = vpop.f32.mrb[0].mxu0
          %662 = vmatprep.mubr.bf16.mxu0 0
          %663 = vmatmul.mubr.bf16.gmra.mrb[0].mxu0 %v586
          %v664 = vpop.f32.mrb[0].mxu0
          %v665 = vadd.f32 0.0, %v664
          %v666 = vpop.f32.mrb[0].mxu0
          %v667 = vpop.f32.mrb[0].mxu0
          %v668 = vadd.f32 0.0, %v667
          %v669 = vpop.f32.mrb[0].mxu0
          %670 = vmatprep.mubr.bf16.mxu0 0
          %671 = vmatmul.mubr.bf16.gmra.mrb[0].mxu0 %v587
          %v672 = vpop.f32.mrb[0].mxu0
          %v673 = vadd.f32 0.0, %v672
          %v674 = vpop.f32.mrb[0].mxu0
          %v675 = vpop.f32.mrb[0].mxu0
          %v676 = vadd.f32 0.0, %v675
          %v677 = vpop.f32.mrb[0].mxu0
          %678 = vmatprep.mubr.bf16.mxu0 0
          %679 = vmatmul.mubr.bf16.gmra.mrb[0].mxu0 %v588
          %v680 = vpop.f32.mrb[0].mxu0
          %v681 = vadd.f32 0.0, %v680
          %v682 = vpop.f32.mrb[0].mxu0
          %v683 = vpop.f32.mrb[0].mxu0
          %v684 = vadd.f32 0.0, %v683
          %v685 = vpop.f32.mrb[0].mxu0
          %686 = vmatprep.mubr.bf16.mxu0 0
          %687 = vmatmul.mubr.bf16.gmra.mrb[0].mxu0 %v589
          %v688 = vpop.f32.mrb[0].mxu0
          %v689 = vadd.f32 0.0, %v688
          %v690 = vpop.f32.mrb[0].mxu0
          %v691 = vpop.f32.mrb[0].mxu0
          %v692 = vadd.f32 0.0, %v691
          %v693 = vpop.f32.mrb[0].mxu0
          %694 = vdwg.mxu0
          %v695 = vadd.f32 %v493, %v633
          %v696 = vadd.f32 %v494, %v636
          %v697 = vadd.f32 %v495, %v641
          %v698 = vadd.f32 %v496, %v644
          %v699 = vadd.f32 %v497, %v649
          %v700 = vadd.f32 %v498, %v652
          %v701 = vadd.f32 %v499, %v657
          %v702 = vadd.f32 %v500, %v660
          %v703 = vadd.f32 %v501, %v665
          %v704 = vadd.f32 %v502, %v668
          %v705 = vadd.f32 %v503, %v673
          %v706 = vadd.f32 %v504, %v676
          %v707 = vadd.f32 %v505, %v681
          %v708 = vadd.f32 %v506, %v684
          %v709 = vadd.f32 %v507, %v689
          %v710 = vadd.f32 %v508, %v692
          %711 = vst [vmem:[#allocation4] sm:$0xff] %v695
          %712 = vst [vmem:[#allocation4 + $0x8] sm:$0xff] %v696
          %713 = vst [vmem:[#allocation4 + $0x10] sm:$0xff] %v697
          %714 = vst [vmem:[#allocation4 + $0x18] sm:$0xff] %v698
          %715 = vst [vmem:[#allocation4 + $0x20] sm:$0xff] %v699
          %716 = vst [vmem:[#allocation4 + $0x28] sm:$0xff] %v700
          %717 = vst [vmem:[#allocation4 + $0x30] sm:$0xff] %v701
          %718 = vst [vmem:[#allocation4 + $0x38] sm:$0xff] %v702
          %719 = vst [vmem:[#allocation4 + $0x40] sm:$0xff] %v703
          %720 = vst [vmem:[#allocation4 + $0x48] sm:$0xff] %v704
          %721 = vst [vmem:[#allocation4 + $0x50] sm:$0xff] %v705
          %722 = vst [vmem:[#allocation4 + $0x58] sm:$0xff] %v706
          %723 = vst [vmem:[#allocation4 + $0x60] sm:$0xff] %v707
          %724 = vst [vmem:[#allocation4 + $0x68] sm:$0xff] %v708
          %725 = vst [vmem:[#allocation4 + $0x70] sm:$0xff] %v709
          %726 = vst [vmem:[#allocation4 + $0x78] sm:$0xff] %v710
        $region52: #{tpu_custom_call.1} parent=27 // pred_fallthru
          _
        // Predicated region
        $region53: #{tpu_custom_call.1} parent=27 // pred_check
          %p727 = pneg %p182
        $region54: #{tpu_custom_call.1} parent=27 // pred_check_branch
          %729 = sbr.rel (%p727) target = $region56
        $region55: #{tpu_custom_call.1} parent=27 // pred_region
          %s730 = smul.u32 %s22, 128
          // Predicated region
          $region57: #{tpu_custom_call.1} parent=55 // pred_check
            %p731 = pneg %p250
          $region58: #{tpu_custom_call.1} parent=55 // pred_check_branch
            %733 = sbr.rel (%p731) target = $region60
          $region59: #{tpu_custom_call.1} parent=55 // pred_region
            %v734 = vld [vmem:[#allocation4] sm:$0xff]
            %v735 = vld [vmem:[#allocation4 + $0x8] sm:$0xff]
            %v736 = vld [vmem:[#allocation4 + $0x10] sm:$0xff]
            %v737 = vld [vmem:[#allocation4 + $0x18] sm:$0xff]
            %v738 = vld [vmem:[#allocation4 + $0x20] sm:$0xff]
            %v739 = vld [vmem:[#allocation4 + $0x28] sm:$0xff]
            %v740 = vld [vmem:[#allocation4 + $0x30] sm:$0xff]
            %v741 = vld [vmem:[#allocation4 + $0x38] sm:$0xff]
            %v742 = vld [vmem:[#allocation4 + $0x40] sm:$0xff]
            %v743 = vld [vmem:[#allocation4 + $0x48] sm:$0xff]
            %v744 = vld [vmem:[#allocation4 + $0x50] sm:$0xff]
            %v745 = vld [vmem:[#allocation4 + $0x58] sm:$0xff]
            %v746 = vld [vmem:[#allocation4 + $0x60] sm:$0xff]
            %v747 = vld [vmem:[#allocation4 + $0x68] sm:$0xff]
            %v748 = vld [vmem:[#allocation4 + $0x70] sm:$0xff]
            %v749 = vld [vmem:[#allocation4 + $0x78] sm:$0xff]
            %s750 = scalar_lea.vmem [#allocation3], %s730
            %751 = vst [vmem:[%s750] sm:$0xff] %v734
            %752 = vst [vmem:[%s750 + $0x8] sm:$0xff] %v735
            %753 = vst [vmem:[%s750 + $0x10] sm:$0xff] %v736
            %754 = vst [vmem:[%s750 + $0x18] sm:$0xff] %v737
            %755 = vst [vmem:[%s750 + $0x20] sm:$0xff] %v738
            %756 = vst [vmem:[%s750 + $0x28] sm:$0xff] %v739
            %757 = vst [vmem:[%s750 + $0x30] sm:$0xff] %v740
            %758 = vst [vmem:[%s750 + $0x38] sm:$0xff] %v741
            %759 = vst [vmem:[%s750 + $0x40] sm:$0xff] %v742
            %760 = vst [vmem:[%s750 + $0x48] sm:$0xff] %v743
            %761 = vst [vmem:[%s750 + $0x50] sm:$0xff] %v744
            %762 = vst [vmem:[%s750 + $0x58] sm:$0xff] %v745
            %763 = vst [vmem:[%s750 + $0x60] sm:$0xff] %v746
            %764 = vst [vmem:[%s750 + $0x68] sm:$0xff] %v747
            %765 = vst [vmem:[%s750 + $0x70] sm:$0xff] %v748
            %766 = vst [vmem:[%s750 + $0x78] sm:$0xff] %v749
          $region60: #{tpu_custom_call.1} parent=55 // pred_fallthru
            _
          // Predicated region
          $region61: #{tpu_custom_call.1} parent=55 // pred_check
            %p767 = pneg %p489
          $region62: #{tpu_custom_call.1} parent=55 // pred_check_branch
            %769 = sbr.rel (%p767) target = $region64
          $region63: #{tpu_custom_call.1} parent=55 // pred_region
            %v770 = vld [vmem:[#allocation4] sm:$0xff]
            %v771 = vld [vmem:[#allocation4 + $0x8] sm:$0xff]
            %v772 = vld [vmem:[#allocation4 + $0x10] sm:$0xff]
            %v773 = vld [vmem:[#allocation4 + $0x18] sm:$0xff]
            %v774 = vld [vmem:[#allocation4 + $0x20] sm:$0xff]
            %v775 = vld [vmem:[#allocation4 + $0x28] sm:$0xff]
            %v776 = vld [vmem:[#allocation4 + $0x30] sm:$0xff]
            %v777 = vld [vmem:[#allocation4 + $0x38] sm:$0xff]
            %v778 = vld [vmem:[#allocation4 + $0x40] sm:$0xff]
            %v779 = vld [vmem:[#allocation4 + $0x48] sm:$0xff]
            %v780 = vld [vmem:[#allocation4 + $0x50] sm:$0xff]
            %v781 = vld [vmem:[#allocation4 + $0x58] sm:$0xff]
            %v782 = vld [vmem:[#allocation4 + $0x60] sm:$0xff]
            %v783 = vld [vmem:[#allocation4 + $0x68] sm:$0xff]
            %v784 = vld [vmem:[#allocation4 + $0x70] sm:$0xff]
            %v785 = vld [vmem:[#allocation4 + $0x78] sm:$0xff]
            %s786 = scalar_lea.vmem [#allocation2], %s730
            %787 = vst [vmem:[%s786] sm:$0xff] %v770
            %788 = vst [vmem:[%s786 + $0x8] sm:$0xff] %v771
            %789 = vst [vmem:[%s786 + $0x10] sm:$0xff] %v772
            %790 = vst [vmem:[%s786 + $0x18] sm:$0xff] %v773
            %791 = vst [vmem:[%s786 + $0x20] sm:$0xff] %v774
            %792 = vst [vmem:[%s786 + $0x28] sm:$0xff] %v775
            %793 = vst [vmem:[%s786 + $0x30] sm:$0xff] %v776
            %794 = vst [vmem:[%s786 + $0x38] sm:$0xff] %v777
            %795 = vst [vmem:[%s786 + $0x40] sm:$0xff] %v778
            %796 = vst [vmem:[%s786 + $0x48] sm:$0xff] %v779
            %797 = vst [vmem:[%s786 + $0x50] sm:$0xff] %v780
            %798 = vst [vmem:[%s786 + $0x58] sm:$0xff] %v781
            %799 = vst [vmem:[%s786 + $0x60] sm:$0xff] %v782
            %800 = vst [vmem:[%s786 + $0x68] sm:$0xff] %v783
            %801 = vst [vmem:[%s786 + $0x70] sm:$0xff] %v784
            %802 = vst [vmem:[%s786 + $0x78] sm:$0xff] %v785
          $region64: #{tpu_custom_call.1} parent=55 // pred_fallthru
            _
          %p803 = scmp.eq.s32.totalorder %s21, 1
          // Predicated region
          $region65: #{tpu_custom_call.1} parent=55 // pred_check
            %p804 = pneg %p803
          $region66: #{tpu_custom_call.1} parent=55 // pred_check_branch
            %806 = sbr.rel (%p804) target = $region68
          $region67: #{tpu_custom_call.1} parent=55 // pred_region
            %v807 = vld [vmem:[#allocation4] sm:$0xff]
            %v808 = vld [vmem:[#allocation4 + $0x8] sm:$0xff]
            %v809 = vld [vmem:[#allocation4 + $0x10] sm:$0xff]
            %v810 = vld [vmem:[#allocation4 + $0x18] sm:$0xff]
            %v811 = vld [vmem:[#allocation4 + $0x20] sm:$0xff]
            %v812 = vld [vmem:[#allocation4 + $0x28] sm:$0xff]
            %v813 = vld [vmem:[#allocation4 + $0x30] sm:$0xff]
            %v814 = vld [vmem:[#allocation4 + $0x38] sm:$0xff]
            %v815 = vld [vmem:[#allocation4 + $0x40] sm:$0xff]
            %v816 = vld [vmem:[#allocation4 + $0x48] sm:$0xff]
            %v817 = vld [vmem:[#allocation4 + $0x50] sm:$0xff]
            %v818 = vld [vmem:[#allocation4 + $0x58] sm:$0xff]
            %v819 = vld [vmem:[#allocation4 + $0x60] sm:$0xff]
            %v820 = vld [vmem:[#allocation4 + $0x68] sm:$0xff]
            %v821 = vld [vmem:[#allocation4 + $0x70] sm:$0xff]
            %v822 = vld [vmem:[#allocation4 + $0x78] sm:$0xff]
            %823 = vst [vmem:[#allocation10] sm:$0xff] %v807
            %824 = vst [vmem:[#allocation10 + $0x8] sm:$0xff] %v808
            %825 = vst [vmem:[#allocation10 + $0x10] sm:$0xff] %v809
            %826 = vst [vmem:[#allocation10 + $0x18] sm:$0xff] %v810
            %827 = vst [vmem:[#allocation10 + $0x20] sm:$0xff] %v811
            %828 = vst [vmem:[#allocation10 + $0x28] sm:$0xff] %v812
            %829 = vst [vmem:[#allocation10 + $0x30] sm:$0xff] %v813
            %830 = vst [vmem:[#allocation10 + $0x38] sm:$0xff] %v814
            %831 = vst [vmem:[#allocation10 + $0x40] sm:$0xff] %v815
            %832 = vst [vmem:[#allocation10 + $0x48] sm:$0xff] %v816
            %833 = vst [vmem:[#allocation10 + $0x50] sm:$0xff] %v817
            %834 = vst [vmem:[#allocation10 + $0x58] sm:$0xff] %v818
            %835 = vst [vmem:[#allocation10 + $0x60] sm:$0xff] %v819
            %836 = vst [vmem:[#allocation10 + $0x68] sm:$0xff] %v820
            %837 = vst [vmem:[#allocation10 + $0x70] sm:$0xff] %v821
            %838 = vst [vmem:[#allocation10 + $0x78] sm:$0xff] %v822
          $region68: #{tpu_custom_call.1} parent=55 // pred_fallthru
            _
        $region56: #{tpu_custom_call.1} parent=27 // pred_fallthru
          _
        // Predicated region
        $region69: #{tpu_custom_call.1} parent=27 // pred_check
          %p839 = pneg %p102
        $region70: #{tpu_custom_call.1} parent=27 // pred_check_branch
          %841 = sbr.rel (%p839) target = $region72
        $region71: #{tpu_custom_call.1} parent=27 // pred_region
          %s842 = smul.u32 16, %s22
          %s844 = ssub.s32 2048, 2048
          %845 = vsyncadd [#allocation7], %s844
          %s846 = smul.addr %s842, 128
          %s847 = scalar_lea.hbm %s2, %s846
          %s848 = sshll.u32 [#allocation10], 4
          %s849 = int_to_ptr.vmem [resolvable:$true] %s848
          %854 = dma.vmem_to_hbm [thread:$0]  %s849, 2048, %s847, [#allocation7], 128, 128, 8
        $region72: #{tpu_custom_call.1} parent=27 // pred_fallthru
          _
        // Predicated region
        $region73: #{tpu_custom_call.1} parent=27 // pred_check
          %p855 = pneg %p102
        $region74: #{tpu_custom_call.1} parent=27 // pred_check_branch
          %857 = sbr.rel (%p855) target = $region76
        $region75: #{tpu_custom_call.1} parent=27 // pred_region
          %858 = dma.done [#allocation7], 2048
        $region76: #{tpu_custom_call.1} parent=27 // pred_fallthru
          _
      $region28: #{tpu_custom_call.1} parent=5 // pred_fallthru
        _
      %p859 = scmp.le.s32.totalorder 2, %s11
      // Predicated region
      $region77: #{tpu_custom_call.1} parent=5 // pred_check
        %p860 = pneg %p859
      $region78: #{tpu_custom_call.1} parent=5 // pred_check_branch
        %862 = sbr.rel (%p860) target = $region80
      $region79: #{tpu_custom_call.1} parent=5 // pred_region
        %s863 = ssub.s32 %s11, 2
      $region80: #{tpu_custom_call.1} parent=5 // pred_fallthru
        _
    $region6: #{tpu_custom_call.1} parent=1 // loop_footer
      %s15 = sadd.s32 1, %s11
    $region7: #{tpu_custom_call.1} parent=1 // loop_footer_branch
      %10 = sbr.rel target = $region3
    $region8: #{tpu_custom_call.1} parent=1 // loop_exit
      _
    %864 = vsyncpa [#allocation6], 1
    %s865 = scalar_lea.sflag [#allocation6], 1
    %866 = vsyncpa %s865, 1
    %867 = vsyncpa [#allocation9], 1
    %868 = vsyncpa [#allocation7], 1
    %s869 = scalar_lea.sflag [#allocation7], 1
    %870 = vsyncpa %s869, 1

</llo_original>
